<compile_context>
chip_gen: v6e
topology: v6e:2x2x1
jax: 0.10.0
libtpu: 0.0.40
codegen_flags: <defaults>
</compile_context>

<pallas_src>
import math

import jax
import jax.numpy as jnp
from jax.experimental import pallas as pl
from jax.experimental.pallas import tpu as pltpu

LANE = 128


def _round_up(n, m):
    return ((n + m - 1) // m) * m


def mlp_kernel(x_ref, w_ref, aux_ref, out_ref):
    """x_ref:   [batch, D]            f32, features zero-padded to D lanes
    w_ref:      [n_hidden*D, D]       bf16 packed, zero-padded hidden weights
    aux_ref:    [(n_hidden+2)*batch, D] f32:
                  rows [li*batch,(li+1)*batch)       : bias of layer li (pre-broadcast)
                  rows [n_hidden*batch, +batch)      : final weight row (pre-broadcast)
                  rows [(n_hidden+1)*batch, +batch)  : final bias in all lanes
    out_ref:    [batch, D]            f32, result replicated across lanes
    """
    d = w_ref.shape[1]
    batch = x_ref.shape[0]
    n_hidden = w_ref.shape[0] // d

    h = x_ref[...]                                     # [batch, d] f32

    # Hidden chain: Linear (bf16 MXU, f32 acc) + (dropout=identity) + ReLU.
    for li in range(n_hidden):
        w = w_ref[li * d:(li + 1) * d, :]              # [d, d] bf16, aligned tile
        bias = aux_ref[li * batch:(li + 1) * batch, :] # [batch, d] f32, no sublane bcast
        acc = jnp.dot(h.astype(jnp.bfloat16), w,
                      preferred_element_type=jnp.float32)
        h = jnp.maximum(acc + bias, 0.0)

    # Final [*, 1] projection on VPU/XLU: broadcast-mul + lane reduce.
    w_fin = aux_ref[n_hidden * batch:(n_hidden + 1) * batch, :]        # [batch, d]
    b_fin = aux_ref[(n_hidden + 1) * batch:(n_hidden + 2) * batch, :]  # [batch, d]
    res = jnp.sum(h * w_fin, axis=-1, keepdims=True)                   # [batch, 1]
    # Lane-dense store: result replicated across all lanes by the broadcast add.
    out_ref[...] = (res + b_fin).astype(out_ref.dtype)


def pack_mlp_params(params, batch, d):
    """ONE-TIME packing of [(W [in,out], b [1,out]), ...] into kernel slabs.

    Zero padding keeps padded lanes of the activation exactly 0 through every
    layer, so results match the unpadded math (up to bf16 weight rounding).
    """
    w_blocks = []
    aux_rows = []
    for w, b in params[:-1]:
        wp = jnp.pad(w, ((0, d - w.shape[0]), (0, d - w.shape[1])))
        w_blocks.append(wp.astype(jnp.bfloat16))
        bp = jnp.pad(b, ((0, 0), (0, d - b.shape[1])))          # [1, d]
        aux_rows.append(jnp.broadcast_to(bp, (batch, d)))       # pre-broadcast

    w_last, b_last = params[-1]                                 # [in, 1], [1, 1]
    w_fin = jnp.pad(w_last.T, ((0, 0), (0, d - w_last.shape[0])))
    aux_rows.append(jnp.broadcast_to(w_fin, (batch, d)))
    aux_rows.append(jnp.broadcast_to(b_last, (batch, d)))       # bias in all lanes

    w_slab = jnp.concatenate(w_blocks, axis=0)                          # bf16 [n_hidden*d, d]
    aux = jnp.concatenate(aux_rows, axis=0).astype(jnp.float32)         # f32 [(n_hidden+2)*batch, d]
    return w_slab, aux


@jax.jit
def mlp_forward(x, w_slab, aux):
    """x: [batch, n_features] f32; w_slab/aux: pre-packed by pack_mlp_params."""
    batch, n_features = x.shape
    d = w_slab.shape[1]
    x_pad = jnp.pad(x, ((0, 0), (0, d - n_features)))

    vmem = pl.BlockSpec(memory_space=pltpu.MemorySpace.VMEM)
    out = pl.pallas_call(
        mlp_kernel,
        out_shape=jax.ShapeDtypeStruct((batch, d), jnp.float32),
        in_specs=[vmem, vmem, vmem],
        out_specs=vmem,
    )(x_pad, w_slab, aux)
    return out[:, :1]                                   # lane-dense -> [batch, 1]


def init_linear(key, in_dim, out_dim):
    """Deterministic init matching torch.nn.Linear's U(-1/sqrt(in), 1/sqrt(in))."""
    kw, kb = jax.random.split(key)
    bound = 1.0 / math.sqrt(in_dim)
    w = jax.random.uniform(kw, (in_dim, out_dim), jnp.float32, -bound, bound)
    b = jax.random.uniform(kb, (1, out_dim), jnp.float32, -bound, bound)
    return w, b


def build_mlp_params(key, n_features, hidden_width, n_additional_hidden_layers,
                     dense_rate=2):
    dims = [n_features, hidden_width]
    for i in range(1, n_additional_hidden_layers + 1):
        dims.append(int(hidden_width / dense_rate ** i))
    dims.append(1)  # final projection
    keys = jax.random.split(key, len(dims) - 1)
    return [init_linear(k, din, dout)
            for k, din, dout in zip(keys, dims[:-1], dims[1:])]


if __name__ == "__main__":
    # Small shapes consistent with the module's forward:
    #   batch=8, n_features=16, hidden_width=128, 4 additional hidden layers
    #   -> dims 16 -> 128 -> 64 -> 32 -> 16 -> 8 -> 1
    batch = 8
    n_features = 16
    hidden_width = 128
    n_additional = 4

    root = jax.random.PRNGKey(0)
    kx, kp = jax.random.split(root)

    x = jax.random.normal(kx, (batch, n_features), jnp.float32)
    params = build_mlp_params(kp, n_features, hidden_width, n_additional)

    # --- one-time init-time packing (hoisted out of the per-call path) ---
    max_dim = max([n_features] + [w.shape[1] for w, _ in params[:-1]])
    d = _round_up(max_dim, LANE)
    w_slab, aux = pack_mlp_params(params, batch, d)
    w_slab, aux = jax.block_until_ready((w_slab, aux))

    out = mlp_forward(x, w_slab, aux)
    jax.block_until_ready(out)

    # Pure-JAX f32 reference (same math on the UNPADDED params).
    # Tolerance loosened because the kernel feeds bf16 operands to the MXU.
    h = x
    for i, (w, b) in enumerate(params):
        h = h @ w + b
        if i < len(params) - 1:
            h = jnp.maximum(h, 0.0)
    assert out.shape == (batch, 1)
    assert jnp.allclose(out, h, atol=5e-2, rtol=5e-2)

    print("KERNEL_OK")
</pallas_src>

<mosaic_0001>
module attributes {stable_mosaic.version = 11 : i64} {
  func.func @mlp_kernel(%arg0: memref<8x128xf32, #tpu.memory_space<vmem>>, %arg1: memref<640x128xbf16, #tpu.memory_space<vmem>>, %arg2: memref<56x128xf32, #tpu.memory_space<vmem>>, %arg3: memref<8x128xf32, #tpu.memory_space<vmem>>) attributes {dimension_semantics = [], scalar_prefetch = 0 : i64, scratch_operands = 0 : i64, tpu.core_type = #tpu.core_type<tc>} {
    %c0 = arith.constant 0 : index
    %c0_0 = arith.constant 0 : index
    %0 = vector.load %arg0[%c0, %c0_0] : memref<8x128xf32, #tpu.memory_space<vmem>>, vector<8x128xf32>
    %c0_1 = arith.constant 0 : index
    %c0_2 = arith.constant 0 : index
    %1 = vector.load %arg1[%c0_1, %c0_2] : memref<640x128xbf16, #tpu.memory_space<vmem>>, vector<128x128xbf16>
    %c0_3 = arith.constant 0 : index
    %c0_4 = arith.constant 0 : index
    %2 = vector.load %arg2[%c0_3, %c0_4] : memref<56x128xf32, #tpu.memory_space<vmem>>, vector<8x128xf32>
    %3 = arith.truncf %0 : vector<8x128xf32> to vector<8x128xbf16>
    %cst = arith.constant dense<0.000000e+00> : vector<8x128xf32>
    %4 = tpu.matmul %3, %1, %cst {dimension_numbers = #tpu.dot_dimension_numbers<[1], [0], [0], [1], [0, 0, 1, 1], [], []>} : vector<8x128xbf16>, vector<128x128xbf16>, vector<8x128xf32> -> vector<8x128xf32>
    %5 = arith.addf %4, %2 : vector<8x128xf32>
    %cst_5 = arith.constant 0.000000e+00 : f32
    %6 = vector.broadcast %cst_5 : f32 to vector<8x128xf32>
    %7 = arith.maximumf %5, %6 : vector<8x128xf32>
    %c128 = arith.constant 128 : index
    %c0_6 = arith.constant 0 : index
    %8 = vector.load %arg1[%c128, %c0_6] : memref<640x128xbf16, #tpu.memory_space<vmem>>, vector<128x128xbf16>
    %c8 = arith.constant 8 : index
    %c0_7 = arith.constant 0 : index
    %9 = vector.load %arg2[%c8, %c0_7] : memref<56x128xf32, #tpu.memory_space<vmem>>, vector<8x128xf32>
    %10 = arith.truncf %7 : vector<8x128xf32> to vector<8x128xbf16>
    %cst_8 = arith.constant dense<0.000000e+00> : vector<8x128xf32>
    %11 = tpu.matmul %10, %8, %cst_8 {dimension_numbers = #tpu.dot_dimension_numbers<[1], [0], [0], [1], [0, 0, 1, 1], [], []>} : vector<8x128xbf16>, vector<128x128xbf16>, vector<8x128xf32> -> vector<8x128xf32>
    %12 = arith.addf %11, %9 : vector<8x128xf32>
    %cst_9 = arith.constant 0.000000e+00 : f32
    %13 = vector.broadcast %cst_9 : f32 to vector<8x128xf32>
    %14 = arith.maximumf %12, %13 : vector<8x128xf32>
    %c256 = arith.constant 256 : index
    %c0_10 = arith.constant 0 : index
    %15 = vector.load %arg1[%c256, %c0_10] : memref<640x128xbf16, #tpu.memory_space<vmem>>, vector<128x128xbf16>
    %c16 = arith.constant 16 : index
    %c0_11 = arith.constant 0 : index
    %16 = vector.load %arg2[%c16, %c0_11] : memref<56x128xf32, #tpu.memory_space<vmem>>, vector<8x128xf32>
    %17 = arith.truncf %14 : vector<8x128xf32> to vector<8x128xbf16>
    %cst_12 = arith.constant dense<0.000000e+00> : vector<8x128xf32>
    %18 = tpu.matmul %17, %15, %cst_12 {dimension_numbers = #tpu.dot_dimension_numbers<[1], [0], [0], [1], [0, 0, 1, 1], [], []>} : vector<8x128xbf16>, vector<128x128xbf16>, vector<8x128xf32> -> vector<8x128xf32>
    %19 = arith.addf %18, %16 : vector<8x128xf32>
    %cst_13 = arith.constant 0.000000e+00 : f32
    %20 = vector.broadcast %cst_13 : f32 to vector<8x128xf32>
    %21 = arith.maximumf %19, %20 : vector<8x128xf32>
    %c384 = arith.constant 384 : index
    %c0_14 = arith.constant 0 : index
    %22 = vector.load %arg1[%c384, %c0_14] : memref<640x128xbf16, #tpu.memory_space<vmem>>, vector<128x128xbf16>
    %c24 = arith.constant 24 : index
    %c0_15 = arith.constant 0 : index
    %23 = vector.load %arg2[%c24, %c0_15] : memref<56x128xf32, #tpu.memory_space<vmem>>, vector<8x128xf32>
    %24 = arith.truncf %21 : vector<8x128xf32> to vector<8x128xbf16>
    %cst_16 = arith.constant dense<0.000000e+00> : vector<8x128xf32>
    %25 = tpu.matmul %24, %22, %cst_16 {dimension_numbers = #tpu.dot_dimension_numbers<[1], [0], [0], [1], [0, 0, 1, 1], [], []>} : vector<8x128xbf16>, vector<128x128xbf16>, vector<8x128xf32> -> vector<8x128xf32>
    %26 = arith.addf %25, %23 : vector<8x128xf32>
    %cst_17 = arith.constant 0.000000e+00 : f32
    %27 = vector.broadcast %cst_17 : f32 to vector<8x128xf32>
    %28 = arith.maximumf %26, %27 : vector<8x128xf32>
    %c512 = arith.constant 512 : index
    %c0_18 = arith.constant 0 : index
    %29 = vector.load %arg1[%c512, %c0_18] : memref<640x128xbf16, #tpu.memory_space<vmem>>, vector<128x128xbf16>
    %c32 = arith.constant 32 : index
    %c0_19 = arith.constant 0 : index
    %30 = vector.load %arg2[%c32, %c0_19] : memref<56x128xf32, #tpu.memory_space<vmem>>, vector<8x128xf32>
    %31 = arith.truncf %28 : vector<8x128xf32> to vector<8x128xbf16>
    %cst_20 = arith.constant dense<0.000000e+00> : vector<8x128xf32>
    %32 = tpu.matmul %31, %29, %cst_20 {dimension_numbers = #tpu.dot_dimension_numbers<[1], [0], [0], [1], [0, 0, 1, 1], [], []>} : vector<8x128xbf16>, vector<128x128xbf16>, vector<8x128xf32> -> vector<8x128xf32>
    %33 = arith.addf %32, %30 : vector<8x128xf32>
    %cst_21 = arith.constant 0.000000e+00 : f32
    %34 = vector.broadcast %cst_21 : f32 to vector<8x128xf32>
    %35 = arith.maximumf %33, %34 : vector<8x128xf32>
    %c40 = arith.constant 40 : index
    %c0_22 = arith.constant 0 : index
    %36 = vector.load %arg2[%c40, %c0_22] : memref<56x128xf32, #tpu.memory_space<vmem>>, vector<8x128xf32>
    %c48 = arith.constant 48 : index
    %c0_23 = arith.constant 0 : index
    %37 = vector.load %arg2[%c48, %c0_23] : memref<56x128xf32, #tpu.memory_space<vmem>>, vector<8x128xf32>
    %38 = arith.mulf %35, %36 : vector<8x128xf32>
    %cst_24 = arith.constant dense<0.000000e+00> : vector<8xf32>
    %39 = vector.multi_reduction <add>, %38, %cst_24 [1] : vector<8x128xf32> to vector<8xf32>
    %40 = vector.shape_cast %39 : vector<8xf32> to vector<8x1xf32>
    %41 = vector.broadcast %40 : vector<8x1xf32> to vector<8x128xf32>
    %42 = arith.addf %41, %37 : vector<8x128xf32>
    %c0_25 = arith.constant 0 : index
    %c0_26 = arith.constant 0 : index
    %43 = vector.load %arg3[%c0_25, %c0_26] : memref<8x128xf32, #tpu.memory_space<vmem>>, vector<8x128xf32>
    tpu.vector_store %arg3[%c0_25, %c0_26], %42 {strides = array<i32>} : memref<8x128xf32, #tpu.memory_space<vmem>>, vector<8x128xf32>,
    return
  }
}

</mosaic_0001>

<llo_original>
// kernel: mlp_forward.1
$region0: #{mlp_forward.1}
  #allocation0 [shape = 'u32[]', space=smem, size = 0x4, offset = 0x4, fixed_abs, tag = 'smem constant byte address 0x4 - core index']
  #allocation1 [shape = 'u32[144,128]{1,0:T(1,128)}', space=vmem, size = 0x12000, scoped, tag = 'internal scratch']
  %s0 = inlined_call_operand.vmem [shape: f32[8,128], index: 0, kind: input, shape index: {}]
  %s1 = inlined_call_operand.hbm [shape: bf16[640,128], index: 1, kind: input, shape index: {}]
  %s2 = inlined_call_operand.hbm [shape: f32[56,128], index: 2, kind: input, shape index: {}]
  %s3 = inlined_call_operand.vmem [shape: f32[8,128], index: 3, kind: output, shape index: {}]
  %s4 = sld [smem:[#allocation0]]
  $region30: #{mlp_forward.1} parent=0
    _
  %s6 = ssub.s32 1, %s4
  %s7 = scalar_select 0, %s6, %s4
  $region1: #{mlp_forward.1} parent=0
    #allocation2 [shape = 'u8[163840]{0}', space=vmem, size = 0x28000, scoped, tag = 'input window, operand 1, single buffered']
    #allocation3 [shape = 's32[1]{0}', space=sflag, size = 0x4, scoped, tag = 'scoped memory for mlp_forward.1']
    #allocation4 [shape = 'u8[28672]{0}', space=vmem, size = 0x7000, scoped, tag = 'input window, operand 2, single buffered']
    #allocation5 [shape = 's32[1]{0}', space=sflag, size = 0x4, scoped, tag = 'scoped memory for mlp_forward.1']
    %8 = vsyncpa [#allocation3], 0
    %9 = vsyncpa [#allocation5], 0
    // Predicated region
    $region2: #{mlp_forward.1} parent=1 // pred_check
      _
    $region3: #{mlp_forward.1} parent=1 // pred_check_branch
      %11 = sbr.rel (0) target = $region5
    $region4: #{mlp_forward.1} parent=1 // pred_region
      _
    $region5: #{mlp_forward.1} parent=1 // pred_fallthru
      _
    // Predicated region
    $region6: #{mlp_forward.1} parent=1 // pred_check
      _
    $region7: #{mlp_forward.1} parent=1 // pred_check_branch
      %13 = sbr.rel (0) target = $region9
    $region8: #{mlp_forward.1} parent=1 // pred_region
      %s15 = ssub.s32 5120, 5120
      %16 = vsyncadd [#allocation3], %s15
      %s17 = sshll.u32 [#allocation2], 4
      %s18 = int_to_ptr.vmem [resolvable:$true] %s17
      %23 = dma.hbm_to_vmem [thread:$0]  %s1, 5120, %s18, [#allocation3], 64, 64, 4
    $region9: #{mlp_forward.1} parent=1 // pred_fallthru
      _
    // Predicated region
    $region10: #{mlp_forward.1} parent=1 // pred_check
      _
    $region11: #{mlp_forward.1} parent=1 // pred_check_branch
      %25 = sbr.rel (0) target = $region13
    $region12: #{mlp_forward.1} parent=1 // pred_region
      %s27 = ssub.s32 896, 896
      %28 = vsyncadd [#allocation5], %s27
      %s29 = sshll.u32 [#allocation4], 4
      %s30 = int_to_ptr.vmem [resolvable:$true] %s29
      %35 = dma.hbm_to_vmem [thread:$0]  %s2, 896, %s30, [#allocation5], 128, 128, 8
    $region13: #{mlp_forward.1} parent=1 // pred_fallthru
      _
    // Predicated region
    $region14: #{mlp_forward.1} parent=1 // pred_check
      _
    $region15: #{mlp_forward.1} parent=1 // pred_check_branch
      %37 = sbr.rel (0) target = $region17
    $region16: #{mlp_forward.1} parent=1 // pred_region
      %38 = dma.done [#allocation3], 5120
    $region17: #{mlp_forward.1} parent=1 // pred_fallthru
      _
    // Predicated region
    $region18: #{mlp_forward.1} parent=1 // pred_check
      _
    $region19: #{mlp_forward.1} parent=1 // pred_check_branch
      %40 = sbr.rel (0) target = $region21
    $region20: #{mlp_forward.1} parent=1 // pred_region
      %41 = dma.done [#allocation5], 896
    $region21: #{mlp_forward.1} parent=1 // pred_fallthru
      _
    %v43 = vld [vmem:[%s0] sm:$0xff]
    %v44 = vld [vmem:[#allocation2] sm:$0xf]
    %v45 = vld [vmem:[#allocation2 + $0x4] sm:$0xf]
    %v46 = vld [vmem:[#allocation2 + $0x8] sm:$0xf]
    %v47 = vld [vmem:[#allocation2 + $0xc] sm:$0xf]
    %v48 = vld [vmem:[#allocation2 + $0x10] sm:$0xf]
    %v49 = vld [vmem:[#allocation2 + $0x14] sm:$0xf]
    %v50 = vld [vmem:[#allocation2 + $0x18] sm:$0xf]
    %v51 = vld [vmem:[#allocation2 + $0x1c] sm:$0xf]
    %v52 = vld [vmem:[#allocation2 + $0x20] sm:$0xf]
    %v53 = vld [vmem:[#allocation2 + $0x24] sm:$0xf]
    %v54 = vld [vmem:[#allocation2 + $0x28] sm:$0xf]
    %v55 = vld [vmem:[#allocation2 + $0x2c] sm:$0xf]
    %v56 = vld [vmem:[#allocation2 + $0x30] sm:$0xf]
    %v57 = vld [vmem:[#allocation2 + $0x34] sm:$0xf]
    %v58 = vld [vmem:[#allocation2 + $0x38] sm:$0xf]
    %v59 = vld [vmem:[#allocation2 + $0x3c] sm:$0xf]
    %v60 = vld [vmem:[#allocation4] sm:$0xff]
    %v61 = vpack.c.bf16 %v43, %v43
    %v78 = vunpack.c.l.b16 %v44
    %v79 = vunpack.c.l.b16 %v45
    %v80 = vunpack.c.l.b16 %v46
    %v81 = vunpack.c.l.b16 %v47
    %v82 = vunpack.c.l.b16 %v48
    %v83 = vunpack.c.l.b16 %v49
    %v84 = vunpack.c.l.b16 %v50
    %v85 = vunpack.c.l.b16 %v51
    %v86 = vunpack.c.l.b16 %v52
    %v87 = vunpack.c.l.b16 %v53
    %v88 = vunpack.c.l.b16 %v54
    %v89 = vunpack.c.l.b16 %v55
    %v90 = vunpack.c.l.b16 %v56
    %v91 = vunpack.c.l.b16 %v57
    %v92 = vunpack.c.l.b16 %v58
    %v93 = vunpack.c.l.b16 %v59
    %v94 = vpack.c.b16 %v79, %v78
    %v95 = vpack.c.b16 %v81, %v80
    %v96 = vpack.c.b16 %v83, %v82
    %v97 = vpack.c.b16 %v85, %v84
    %v98 = vpack.c.b16 %v87, %v86
    %v99 = vpack.c.b16 %v89, %v88
    %v100 = vpack.c.b16 %v91, %v90
    %v101 = vpack.c.b16 %v93, %v92
    %110 = vmatprep.subr.bf16.mxu0 0
    %111 = vmatpush1.bf16.msra.mxu0 %v101
    %112 = vmatprep.subr.bf16.mxu0 0
    %113 = vmatpush1.bf16.msra.mxu0 %v100
    %114 = vmatprep.subr.bf16.mxu0 0
    %115 = vmatpush1.bf16.msra.mxu0 %v99
    %116 = vmatprep.subr.bf16.mxu0 0
    %117 = vmatpush1.bf16.msra.mxu0 %v98
    %118 = vmatprep.subr.bf16.mxu0 0
    %119 = vmatpush1.bf16.msra.mxu0 %v97
    %120 = vmatprep.subr.bf16.mxu0 0
    %121 = vmatpush1.bf16.msra.mxu0 %v96
    %122 = vmatprep.subr.bf16.mxu0 0
    %123 = vmatpush1.bf16.msra.mxu0 %v95
    %124 = vmatprep.subr.bf16.mxu0 0
    %125 = vmatpush1.bf16.msra.mxu0 %v94
    %126 = vmatprep.subr.bf16.mxu0 0
    %127 = vmatpush2.bf16.msra.mxu0 0
    %128 = vmatprep.subr.bf16.mxu0 0
    %129 = vmatpush2.bf16.msra.mxu0 0
    %130 = vmatprep.subr.bf16.mxu0 0
    %131 = vmatpush2.bf16.msra.mxu0 0
    %132 = vmatprep.subr.bf16.mxu0 0
    %133 = vmatpush2.bf16.msra.mxu0 0
    %134 = vmatprep.subr.bf16.mxu0 0
    %135 = vmatpush2.bf16.msra.mxu0 0
    %136 = vmatprep.subr.bf16.mxu0 0
    %137 = vmatpush2.bf16.msra.mxu0 0
    %138 = vmatprep.subr.bf16.mxu0 0
    %139 = vmatpush2.bf16.msra.mxu0 0
    %140 = vmatprep.subr.bf16.mxu0 0
    %141 = vmatpush2.bf16.msra.mxu0 0
    %142 = vmatprep.mubr.bf16.mxu0 0
    %143 = vmatmul.mubr.bf16.gmra.mxu0 %v61
    %v144 = vpop.f32.mrf.mxu0
    %v145 = vadd.f32 %v60, %v144
    %v146 = vpop.f32.mrf.mxu0
    %v147 = vpop.f32.mrf.mxu0
    %v148 = vpop.f32.mrf.mxu0
    %149 = vdwg.mxu0
    %v150 = vmax.f32 %v145, 0.0
    %v151 = vld [vmem:[#allocation2 + $0x40] sm:$0xf]
    %v152 = vld [vmem:[#allocation2 + $0x44] sm:$0xf]
    %v153 = vld [vmem:[#allocation2 + $0x48] sm:$0xf]
    %v154 = vld [vmem:[#allocation2 + $0x4c] sm:$0xf]
    %v155 = vld [vmem:[#allocation2 + $0x50] sm:$0xf]
    %v156 = vld [vmem:[#allocation2 + $0x54] sm:$0xf]
    %v157 = vld [vmem:[#allocation2 + $0x58] sm:$0xf]
    %v158 = vld [vmem:[#allocation2 + $0x5c] sm:$0xf]
    %v159 = vld [vmem:[#allocation2 + $0x60] sm:$0xf]
    %v160 = vld [vmem:[#allocation2 + $0x64] sm:$0xf]
    %v161 = vld [vmem:[#allocation2 + $0x68] sm:$0xf]
    %v162 = vld [vmem:[#allocation2 + $0x6c] sm:$0xf]
    %v163 = vld [vmem:[#allocation2 + $0x70] sm:$0xf]
    %v164 = vld [vmem:[#allocation2 + $0x74] sm:$0xf]
    %v165 = vld [vmem:[#allocation2 + $0x78] sm:$0xf]
    %v166 = vld [vmem:[#allocation2 + $0x7c] sm:$0xf]
    %v167 = vld [vmem:[#allocation4 + $0x8] sm:$0xff]
    %v168 = vpack.c.bf16 %v150, %v150
    %v185 = vunpack.c.l.b16 %v151
    %v186 = vunpack.c.l.b16 %v152
    %v187 = vunpack.c.l.b16 %v153
    %v188 = vunpack.c.l.b16 %v154
    %v189 = vunpack.c.l.b16 %v155
    %v190 = vunpack.c.l.b16 %v156
    %v191 = vunpack.c.l.b16 %v157
    %v192 = vunpack.c.l.b16 %v158
    %v193 = vunpack.c.l.b16 %v159
    %v194 = vunpack.c.l.b16 %v160
    %v195 = vunpack.c.l.b16 %v161
    %v196 = vunpack.c.l.b16 %v162
    %v197 = vunpack.c.l.b16 %v163
    %v198 = vunpack.c.l.b16 %v164
    %v199 = vunpack.c.l.b16 %v165
    %v200 = vunpack.c.l.b16 %v166
    %v201 = vpack.c.b16 %v186, %v185
    %v202 = vpack.c.b16 %v188, %v187
    %v203 = vpack.c.b16 %v190, %v189
    %v204 = vpack.c.b16 %v192, %v191
    %v205 = vpack.c.b16 %v194, %v193
    %v206 = vpack.c.b16 %v196, %v195
    %v207 = vpack.c.b16 %v198, %v197
    %v208 = vpack.c.b16 %v200, %v199
    %217 = vmatprep.subr.bf16.mxu0 0
    %218 = vmatpush1.bf16.msra.mxu0 %v208
    %219 = vmatprep.subr.bf16.mxu0 0
    %220 = vmatpush1.bf16.msra.mxu0 %v207
    %221 = vmatprep.subr.bf16.mxu0 0
    %222 = vmatpush1.bf16.msra.mxu0 %v206
    %223 = vmatprep.subr.bf16.mxu0 0
    %224 = vmatpush1.bf16.msra.mxu0 %v205
    %225 = vmatprep.subr.bf16.mxu0 0
    %226 = vmatpush1.bf16.msra.mxu0 %v204
    %227 = vmatprep.subr.bf16.mxu0 0
    %228 = vmatpush1.bf16.msra.mxu0 %v203
    %229 = vmatprep.subr.bf16.mxu0 0
    %230 = vmatpush1.bf16.msra.mxu0 %v202
    %231 = vmatprep.subr.bf16.mxu0 0
    %232 = vmatpush1.bf16.msra.mxu0 %v201
    %233 = vmatprep.subr.bf16.mxu0 0
    %234 = vmatpush2.bf16.msra.mxu0 0
    %235 = vmatprep.subr.bf16.mxu0 0
    %236 = vmatpush2.bf16.msra.mxu0 0
    %237 = vmatprep.subr.bf16.mxu0 0
    %238 = vmatpush2.bf16.msra.mxu0 0
    %239 = vmatprep.subr.bf16.mxu0 0
    %240 = vmatpush2.bf16.msra.mxu0 0
    %241 = vmatprep.subr.bf16.mxu0 0
    %242 = vmatpush2.bf16.msra.mxu0 0
    %243 = vmatprep.subr.bf16.mxu0 0
    %244 = vmatpush2.bf16.msra.mxu0 0
    %245 = vmatprep.subr.bf16.mxu0 0
    %246 = vmatpush2.bf16.msra.mxu0 0
    %247 = vmatprep.subr.bf16.mxu0 0
    %248 = vmatpush2.bf16.msra.mxu0 0
    %249 = vmatprep.mubr.bf16.mxu0 0
    %250 = vmatmul.mubr.bf16.gmra.mxu0 %v168
    %v251 = vpop.f32.mrf.mxu0
    %v252 = vadd.f32 %v167, %v251
    %v253 = vpop.f32.mrf.mxu0
    %v254 = vpop.f32.mrf.mxu0
    %v255 = vpop.f32.mrf.mxu0
    %256 = vdwg.mxu0
    %v257 = vmax.f32 %v252, 0.0
    %v258 = vld [vmem:[#allocation2 + $0x80] sm:$0xf]
    %v259 = vld [vmem:[#allocation2 + $0x84] sm:$0xf]
    %v260 = vld [vmem:[#allocation2 + $0x88] sm:$0xf]
    %v261 = vld [vmem:[#allocation2 + $0x8c] sm:$0xf]
    %v262 = vld [vmem:[#allocation2 + $0x90] sm:$0xf]
    %v263 = vld [vmem:[#allocation2 + $0x94] sm:$0xf]
    %v264 = vld [vmem:[#allocation2 + $0x98] sm:$0xf]
    %v265 = vld [vmem:[#allocation2 + $0x9c] sm:$0xf]
    %v266 = vld [vmem:[#allocation2 + $0xa0] sm:$0xf]
    %v267 = vld [vmem:[#allocation2 + $0xa4] sm:$0xf]
    %v268 = vld [vmem:[#allocation2 + $0xa8] sm:$0xf]
    %v269 = vld [vmem:[#allocation2 + $0xac] sm:$0xf]
    %v270 = vld [vmem:[#allocation2 + $0xb0] sm:$0xf]
    %v271 = vld [vmem:[#allocation2 + $0xb4] sm:$0xf]
    %v272 = vld [vmem:[#allocation2 + $0xb8] sm:$0xf]
    %v273 = vld [vmem:[#allocation2 + $0xbc] sm:$0xf]
    %v274 = vld [vmem:[#allocation4 + $0x10] sm:$0xff]
    %v275 = vpack.c.bf16 %v257, %v257
    %v292 = vunpack.c.l.b16 %v258
    %v293 = vunpack.c.l.b16 %v259
    %v294 = vunpack.c.l.b16 %v260
    %v295 = vunpack.c.l.b16 %v261
    %v296 = vunpack.c.l.b16 %v262
    %v297 = vunpack.c.l.b16 %v263
    %v298 = vunpack.c.l.b16 %v264
    %v299 = vunpack.c.l.b16 %v265
    %v300 = vunpack.c.l.b16 %v266
    %v301 = vunpack.c.l.b16 %v267
    %v302 = vunpack.c.l.b16 %v268
    %v303 = vunpack.c.l.b16 %v269
    %v304 = vunpack.c.l.b16 %v270
    %v305 = vunpack.c.l.b16 %v271
    %v306 = vunpack.c.l.b16 %v272
    %v307 = vunpack.c.l.b16 %v273
    %v308 = vpack.c.b16 %v293, %v292
    %v309 = vpack.c.b16 %v295, %v294
    %v310 = vpack.c.b16 %v297, %v296
    %v311 = vpack.c.b16 %v299, %v298
    %v312 = vpack.c.b16 %v301, %v300
    %v313 = vpack.c.b16 %v303, %v302
    %v314 = vpack.c.b16 %v305, %v304
    %v315 = vpack.c.b16 %v307, %v306
    %324 = vmatprep.subr.bf16.mxu0 0
    %325 = vmatpush1.bf16.msra.mxu0 %v315
    %326 = vmatprep.subr.bf16.mxu0 0
    %327 = vmatpush1.bf16.msra.mxu0 %v314
    %328 = vmatprep.subr.bf16.mxu0 0
    %329 = vmatpush1.bf16.msra.mxu0 %v313
    %330 = vmatprep.subr.bf16.mxu0 0
    %331 = vmatpush1.bf16.msra.mxu0 %v312
    %332 = vmatprep.subr.bf16.mxu0 0
    %333 = vmatpush1.bf16.msra.mxu0 %v311
    %334 = vmatprep.subr.bf16.mxu0 0
    %335 = vmatpush1.bf16.msra.mxu0 %v310
    %336 = vmatprep.subr.bf16.mxu0 0
    %337 = vmatpush1.bf16.msra.mxu0 %v309
    %338 = vmatprep.subr.bf16.mxu0 0
    %339 = vmatpush1.bf16.msra.mxu0 %v308
    %340 = vmatprep.subr.bf16.mxu0 0
    %341 = vmatpush2.bf16.msra.mxu0 0
    %342 = vmatprep.subr.bf16.mxu0 0
    %343 = vmatpush2.bf16.msra.mxu0 0
    %344 = vmatprep.subr.bf16.mxu0 0
    %345 = vmatpush2.bf16.msra.mxu0 0
    %346 = vmatprep.subr.bf16.mxu0 0
    %347 = vmatpush2.bf16.msra.mxu0 0
    %348 = vmatprep.subr.bf16.mxu0 0
    %349 = vmatpush2.bf16.msra.mxu0 0
    %350 = vmatprep.subr.bf16.mxu0 0
    %351 = vmatpush2.bf16.msra.mxu0 0
    %352 = vmatprep.subr.bf16.mxu0 0
    %353 = vmatpush2.bf16.msra.mxu0 0
    %354 = vmatprep.subr.bf16.mxu0 0
    %355 = vmatpush2.bf16.msra.mxu0 0
    %356 = vmatprep.mubr.bf16.mxu0 0
    %357 = vmatmul.mubr.bf16.gmra.mxu0 %v275
    %v358 = vpop.f32.mrf.mxu0
    %v359 = vadd.f32 %v274, %v358
    %v360 = vpop.f32.mrf.mxu0
    %v361 = vpop.f32.mrf.mxu0
    %v362 = vpop.f32.mrf.mxu0
    %363 = vdwg.mxu0
    %v364 = vmax.f32 %v359, 0.0
    %v365 = vld [vmem:[#allocation2 + $0xc0] sm:$0xf]
    %v366 = vld [vmem:[#allocation2 + $0xc4] sm:$0xf]
    %v367 = vld [vmem:[#allocation2 + $0xc8] sm:$0xf]
    %v368 = vld [vmem:[#allocation2 + $0xcc] sm:$0xf]
    %v369 = vld [vmem:[#allocation2 + $0xd0] sm:$0xf]
    %v370 = vld [vmem:[#allocation2 + $0xd4] sm:$0xf]
    %v371 = vld [vmem:[#allocation2 + $0xd8] sm:$0xf]
    %v372 = vld [vmem:[#allocation2 + $0xdc] sm:$0xf]
    %v373 = vld [vmem:[#allocation2 + $0xe0] sm:$0xf]
    %v374 = vld [vmem:[#allocation2 + $0xe4] sm:$0xf]
    %v375 = vld [vmem:[#allocation2 + $0xe8] sm:$0xf]
    %v376 = vld [vmem:[#allocation2 + $0xec] sm:$0xf]
    %v377 = vld [vmem:[#allocation2 + $0xf0] sm:$0xf]
    %v378 = vld [vmem:[#allocation2 + $0xf4] sm:$0xf]
    %v379 = vld [vmem:[#allocation2 + $0xf8] sm:$0xf]
    %v380 = vld [vmem:[#allocation2 + $0xfc] sm:$0xf]
    %v381 = vld [vmem:[#allocation4 + $0x18] sm:$0xff]
    %v382 = vpack.c.bf16 %v364, %v364
    %v399 = vunpack.c.l.b16 %v365
    %v400 = vunpack.c.l.b16 %v366
    %v401 = vunpack.c.l.b16 %v367
    %v402 = vunpack.c.l.b16 %v368
    %v403 = vunpack.c.l.b16 %v369
    %v404 = vunpack.c.l.b16 %v370
    %v405 = vunpack.c.l.b16 %v371
    %v406 = vunpack.c.l.b16 %v372
    %v407 = vunpack.c.l.b16 %v373
    %v408 = vunpack.c.l.b16 %v374
    %v409 = vunpack.c.l.b16 %v375
    %v410 = vunpack.c.l.b16 %v376
    %v411 = vunpack.c.l.b16 %v377
    %v412 = vunpack.c.l.b16 %v378
    %v413 = vunpack.c.l.b16 %v379
    %v414 = vunpack.c.l.b16 %v380
    %v415 = vpack.c.b16 %v400, %v399
    %v416 = vpack.c.b16 %v402, %v401
    %v417 = vpack.c.b16 %v404, %v403
    %v418 = vpack.c.b16 %v406, %v405
    %v419 = vpack.c.b16 %v408, %v407
    %v420 = vpack.c.b16 %v410, %v409
    %v421 = vpack.c.b16 %v412, %v411
    %v422 = vpack.c.b16 %v414, %v413
    %431 = vmatprep.subr.bf16.mxu0 0
    %432 = vmatpush1.bf16.msra.mxu0 %v422
    %433 = vmatprep.subr.bf16.mxu0 0
    %434 = vmatpush1.bf16.msra.mxu0 %v421
    %435 = vmatprep.subr.bf16.mxu0 0
    %436 = vmatpush1.bf16.msra.mxu0 %v420
    %437 = vmatprep.subr.bf16.mxu0 0
    %438 = vmatpush1.bf16.msra.mxu0 %v419
    %439 = vmatprep.subr.bf16.mxu0 0
    %440 = vmatpush1.bf16.msra.mxu0 %v418
    %441 = vmatprep.subr.bf16.mxu0 0
    %442 = vmatpush1.bf16.msra.mxu0 %v417
    %443 = vmatprep.subr.bf16.mxu0 0
    %444 = vmatpush1.bf16.msra.mxu0 %v416
    %445 = vmatprep.subr.bf16.mxu0 0
    %446 = vmatpush1.bf16.msra.mxu0 %v415
    %447 = vmatprep.subr.bf16.mxu0 0
    %448 = vmatpush2.bf16.msra.mxu0 0
    %449 = vmatprep.subr.bf16.mxu0 0
    %450 = vmatpush2.bf16.msra.mxu0 0
    %451 = vmatprep.subr.bf16.mxu0 0
    %452 = vmatpush2.bf16.msra.mxu0 0
    %453 = vmatprep.subr.bf16.mxu0 0
    %454 = vmatpush2.bf16.msra.mxu0 0
    %455 = vmatprep.subr.bf16.mxu0 0
    %456 = vmatpush2.bf16.msra.mxu0 0
    %457 = vmatprep.subr.bf16.mxu0 0
    %458 = vmatpush2.bf16.msra.mxu0 0
    %459 = vmatprep.subr.bf16.mxu0 0
    %460 = vmatpush2.bf16.msra.mxu0 0
    %461 = vmatprep.subr.bf16.mxu0 0
    %462 = vmatpush2.bf16.msra.mxu0 0
    %463 = vmatprep.mubr.bf16.mxu0 0
    %464 = vmatmul.mubr.bf16.gmra.mxu0 %v382
    %v465 = vpop.f32.mrf.mxu0
    %v466 = vadd.f32 %v381, %v465
    %v467 = vpop.f32.mrf.mxu0
    %v468 = vpop.f32.mrf.mxu0
    %v469 = vpop.f32.mrf.mxu0
    %470 = vdwg.mxu0
    %v471 = vmax.f32 %v466, 0.0
    %v472 = vld [vmem:[#allocation2 + $0x100] sm:$0xf]
    %v473 = vld [vmem:[#allocation2 + $0x104] sm:$0xf]
    %v474 = vld [vmem:[#allocation2 + $0x108] sm:$0xf]
    %v475 = vld [vmem:[#allocation2 + $0x10c] sm:$0xf]
    %v476 = vld [vmem:[#allocation2 + $0x110] sm:$0xf]
    %v477 = vld [vmem:[#allocation2 + $0x114] sm:$0xf]
    %v478 = vld [vmem:[#allocation2 + $0x118] sm:$0xf]
    %v479 = vld [vmem:[#allocation2 + $0x11c] sm:$0xf]
    %v480 = vld [vmem:[#allocation2 + $0x120] sm:$0xf]
    %v481 = vld [vmem:[#allocation2 + $0x124] sm:$0xf]
    %v482 = vld [vmem:[#allocation2 + $0x128] sm:$0xf]
    %v483 = vld [vmem:[#allocation2 + $0x12c] sm:$0xf]
    %v484 = vld [vmem:[#allocation2 + $0x130] sm:$0xf]
    %v485 = vld [vmem:[#allocation2 + $0x134] sm:$0xf]
    %v486 = vld [vmem:[#allocation2 + $0x138] sm:$0xf]
    %v487 = vld [vmem:[#allocation2 + $0x13c] sm:$0xf]
    %v488 = vld [vmem:[#allocation4 + $0x20] sm:$0xff]
    %v489 = vpack.c.bf16 %v471, %v471
    %v506 = vunpack.c.l.b16 %v472
    %v507 = vunpack.c.l.b16 %v473
    %v508 = vunpack.c.l.b16 %v474
    %v509 = vunpack.c.l.b16 %v475
    %v510 = vunpack.c.l.b16 %v476
    %v511 = vunpack.c.l.b16 %v477
    %v512 = vunpack.c.l.b16 %v478
    %v513 = vunpack.c.l.b16 %v479
    %v514 = vunpack.c.l.b16 %v480
    %v515 = vunpack.c.l.b16 %v481
    %v516 = vunpack.c.l.b16 %v482
    %v517 = vunpack.c.l.b16 %v483
    %v518 = vunpack.c.l.b16 %v484
    %v519 = vunpack.c.l.b16 %v485
    %v520 = vunpack.c.l.b16 %v486
    %v521 = vunpack.c.l.b16 %v487
    %v522 = vpack.c.b16 %v507, %v506
    %v523 = vpack.c.b16 %v509, %v508
    %v524 = vpack.c.b16 %v511, %v510
    %v525 = vpack.c.b16 %v513, %v512
    %v526 = vpack.c.b16 %v515, %v514
    %v527 = vpack.c.b16 %v517, %v516
    %v528 = vpack.c.b16 %v519, %v518
    %v529 = vpack.c.b16 %v521, %v520
    %538 = vmatprep.subr.bf16.mxu0 0
    %539 = vmatpush1.bf16.msra.mxu0 %v529
    %540 = vmatprep.subr.bf16.mxu0 0
    %541 = vmatpush1.bf16.msra.mxu0 %v528
    %542 = vmatprep.subr.bf16.mxu0 0
    %543 = vmatpush1.bf16.msra.mxu0 %v527
    %544 = vmatprep.subr.bf16.mxu0 0
    %545 = vmatpush1.bf16.msra.mxu0 %v526
    %546 = vmatprep.subr.bf16.mxu0 0
    %547 = vmatpush1.bf16.msra.mxu0 %v525
    %548 = vmatprep.subr.bf16.mxu0 0
    %549 = vmatpush1.bf16.msra.mxu0 %v524
    %550 = vmatprep.subr.bf16.mxu0 0
    %551 = vmatpush1.bf16.msra.mxu0 %v523
    %552 = vmatprep.subr.bf16.mxu0 0
    %553 = vmatpush1.bf16.msra.mxu0 %v522
    %554 = vmatprep.subr.bf16.mxu0 0
    %555 = vmatpush2.bf16.msra.mxu0 0
    %556 = vmatprep.subr.bf16.mxu0 0
    %557 = vmatpush2.bf16.msra.mxu0 0
    %558 = vmatprep.subr.bf16.mxu0 0
    %559 = vmatpush2.bf16.msra.mxu0 0
    %560 = vmatprep.subr.bf16.mxu0 0
    %561 = vmatpush2.bf16.msra.mxu0 0
    %562 = vmatprep.subr.bf16.mxu0 0
    %563 = vmatpush2.bf16.msra.mxu0 0
    %564 = vmatprep.subr.bf16.mxu0 0
    %565 = vmatpush2.bf16.msra.mxu0 0
    %566 = vmatprep.subr.bf16.mxu0 0
    %567 = vmatpush2.bf16.msra.mxu0 0
    %568 = vmatprep.subr.bf16.mxu0 0
    %569 = vmatpush2.bf16.msra.mxu0 0
    %570 = vmatprep.mubr.bf16.mxu0 0
    %571 = vmatmul.mubr.bf16.gmra.mxu0 %v489
    %v572 = vpop.f32.mrf.mxu0
    %v573 = vadd.f32 %v488, %v572
    %v574 = vpop.f32.mrf.mxu0
    %v575 = vpop.f32.mrf.mxu0
    %v576 = vpop.f32.mrf.mxu0
    %577 = vdwg.mxu0
    %v578 = vmax.f32 %v573, 0.0
    %v579 = vld [vmem:[#allocation4 + $0x28] sm:$0xff]
    %v580 = vld [vmem:[#allocation4 + $0x30] sm:$0xff]
    %v581 = vmul.f32 %v578, %v579
    %582 = vadd.xlane.f32.xlu0 %v581
    %v583 = vpop.xlane.xlu0 %582
    %v584 = vadd.f32 %v583, %v580
    %585 = vst [vmem:[%s3] sm:$0xff] %v584
    // Predicated region
    $region22: #{mlp_forward.1} parent=1 // pred_check
      _
    $region23: #{mlp_forward.1} parent=1 // pred_check_branch
      %587 = sbr.rel (0) target = $region25
    $region24: #{mlp_forward.1} parent=1 // pred_region
      _
    $region25: #{mlp_forward.1} parent=1 // pred_fallthru
      _
    // Predicated region
    $region26: #{mlp_forward.1} parent=1 // pred_check
      _
    $region27: #{mlp_forward.1} parent=1 // pred_check_branch
      %589 = sbr.rel (0) target = $region29
    $region28: #{mlp_forward.1} parent=1 // pred_region
      _
    $region29: #{mlp_forward.1} parent=1 // pred_fallthru
      _
    %590 = vsyncpa [#allocation3], 1
    %591 = vsyncpa [#allocation5], 1

</llo_original>
